<compile_context>
chip_gen: v5e
topology: v5e:2x2
jax: 0.10.0
libtpu: 0.0.40
codegen_flags: <defaults>
</compile_context>

<pallas_src>
import jax
import jax.numpy as jnp
from jax.experimental import pallas as pl
from jax.experimental.pallas import tpu as pltpu

IDENT_TENSORS = {
    'affine': [1, 0, 0, 0, 1, 0], 'rotation': [0], 'rotation_scale': [0, 1, 1],
    'rotation_scale_symmetric': [0, 1], 'rotation_translation': [0, 0, 0],
    'rotation_translation_scale': [0, 0, 0, 1, 1],
    'rotation_translation_scale_symmetric': [0, 0, 0, 1], 'scale': [1, 1],
    'scale_symmetric': [1], 'translation': [0, 0],
    'translation_scale': [0, 0, 1, 1], 'translation_scale_symmetric': [0, 0, 1],
}

N_PARAMS = {
    'affine': 6, 'rotation': 1, 'rotation_scale': 3,
    'rotation_scale_symmetric': 2, 'rotation_translation': 3,
    'rotation_translation_scale': 5, 'rotation_translation_scale_symmetric': 4,
    'scale': 2, 'scale_symmetric': 1, 'translation': 2,
    'translation_scale': 4, 'translation_scale_symmetric': 3,
}

NEG_SLOPE = 0.01   # F.leaky_relu default
OUT_PAD = 128      # lane-dense output slab width
H0 = 128           # linear0 out features
H1 = 64            # linear1 out features


def _leaky_relu(v):
    return jnp.where(v > 0, v, NEG_SLOPE * v)


def _round_up(v, m):
    return ((v + m - 1) // m) * m


def _pick_tb(batch, tb_cap):
    """Batch tile: >=16 rows; split into >=2 tiles when possible (megacore)."""
    b16 = _round_up(max(batch, 1), 16)
    tb = min(b16, tb_cap)
    if tb == b16 and b16 >= 32:
        # A single batch tile would leave one v7x TensorCore idle; use ~half.
        tb = min(_round_up(b16 // 2, 16), tb_cap)
    return tb


def _pick_tk(d_pad, tk_cap):
    """Largest multiple of 128 that divides d_pad and is <= tk_cap."""
    m = d_pad // 128
    cap = max(tk_cap // 128, 1)
    best = 1
    for d in range(1, m + 1):
        if m % d == 0 and d <= cap:
            best = d
    return 128 * best


def lochead_kernel(x_ref, w0_ref, b0_ref, w1_ref, b1_ref, w2_ref, b2_ref,
                   o_ref, acc_ref):
    # x_ref:  (TB, TK)  f32 (cast to bf16 in-kernel)   w0_ref: (TK, 128) bf16
    # b0_ref: (1, 128)  f32    w1_ref: (128, 64) f32   b1_ref: (1, 64) f32
    # w2_ref: (64, 128) f32 (lane-padded)  b2_ref: (1, 128) f32 (lane-padded)
    # o_ref:  (TB, 128) f32    acc_ref: (TB, 128) f32 scratch
    k = pl.program_id(1)

    @pl.when(k == 0)
    def _():
        # Fold the first bias into the accumulator init (hoisted out of the
        # k-reduction loop).
        acc_ref[...] = jnp.broadcast_to(b0_ref[...], acc_ref.shape)

    # Layer 0 partial matmul: bf16 operands (cast on the VPU), f32 MXU accum.
    acc_ref[...] += jnp.dot(x_ref[...].astype(jnp.bfloat16), w0_ref[...],
                            preferred_element_type=jnp.float32)

    @pl.when(k == pl.num_programs(1) - 1)
    def _():
        h0 = _leaky_relu(acc_ref[...])                              # (TB, 128)
        h1 = _leaky_relu(
            jnp.dot(h0, w1_ref[...], preferred_element_type=jnp.float32)
            + b1_ref[...])                                          # (TB, 64)
        out = jnp.dot(h1, w2_ref[...], preferred_element_type=jnp.float32) \
            + b2_ref[...]                                           # (TB, 128)
        o_ref[...] = out.astype(o_ref.dtype)


def make_loc_head_params(mode: str, feature_dim: int, key):
    """Deterministic synthetic parameters mirroring LocHead.__init__ shapes."""
    n_params = N_PARAMS[mode]
    k0, k1, k2, k3 = jax.random.split(key, 4)
    # linear0: feature_dim -> 128, linear1: 128 -> 64, linear2: 64 -> n_params
    w0 = (jax.random.normal(k0, (feature_dim, H0), jnp.float32)
          * (1.0 / jnp.sqrt(feature_dim)))
    b0 = jax.random.normal(k1, (1, H0), jnp.float32) * 0.01
    w1 = jax.random.normal(k2, (H0, H1), jnp.float32) * (1.0 / jnp.sqrt(float(H0)))
    b1 = jax.random.normal(k3, (1, H1), jnp.float32) * 0.01
    # linear2.weight zeroed, bias = identity tensor for the mode (PyTorch init)
    w2 = jnp.zeros((H1, n_params), jnp.float32)
    b2 = jnp.asarray(IDENT_TENSORS[mode], jnp.float32).reshape(1, n_params)
    return (w0, b0, w1, b1, w2, b2)


def prepare_loc_head_params(params):
    """One-time prep: cast/pad the bandwidth-heavy / layout-sensitive weights.

    Do this once per parameter set (NOT per forward call) so the w0 f32->bf16
    read+write HBM pass is not paid on every inference.
    """
    w0, b0, w1, b1, w2, b2 = params
    D = w0.shape[0]
    n_params = w2.shape[1]
    D_pad = _round_up(D, 128)
    w0_p = jnp.pad(w0, ((0, D_pad - D), (0, 0))).astype(jnp.bfloat16)
    # Lane-pad the tiny n_params output path to a dense 128-lane slab.
    w2_p = jnp.pad(w2, ((0, 0), (0, OUT_PAD - n_params)))
    b2_p = jnp.pad(b2, ((0, 0), (0, OUT_PAD - n_params)))
    w0_p, b0, w1, b1, w2_p, b2_p = jax.block_until_ready(
        (w0_p, b0, w1, b1, w2_p, b2_p))
    return dict(w0=w0_p, b0=b0, w1=w1, b1=b1, w2=w2_p, b2=b2_p,
                feature_dim=D, n_params=n_params)


def _vmem_capacity_bytes():
    try:
        return int(pltpu.get_tpu_info().vmem_capacity_bytes)
    except Exception:
        return 64 * 2**20   # conservative (v7x per-TC)


def loc_head_forward(x, prepped, *, tb_cap=256, tk_cap=4096):
    """x: NCHW (B, C, H, W) float32. Returns (B, n_params) float32.

    tb_cap / tk_cap bound the batch / reduction tile sizes. Defaults target
    HBM-roofline DMA chunks (x tile up to ~4 MiB f32) and fit comfortably in
    v7x's 64 MiB VMEM; v5e/v6e have more headroom.
    """
    w0_p, b0, w1, b1 = prepped['w0'], prepped['b0'], prepped['w1'], prepped['b1']
    w2_p, b2_p = prepped['w2'], prepped['b2']
    D = prepped['feature_dim']
    n_params = prepped['n_params']

    B = x.shape[0]
    x_flat = x.reshape(B, -1)                  # torch.flatten(x, 1)
    assert x_flat.shape[1] == D, (x_flat.shape, D)

    D_pad = w0_p.shape[0]                      # round_up(D, 128)

    # ---- tiling --------------------------------------------------------------
    TB = _pick_tb(B, tb_cap)
    B_pad = _round_up(B, TB)
    TK = _pick_tk(D_pad, tk_cap)               # divisor of D_pad -> no TK waste
    nk = D_pad // TK
    grid = (B_pad // TB, nk)

    # ---- host-side layout plumbing: pad x only (no dtype cast pass) ----------
    if B_pad != B or D_pad != D:
        x_p = jnp.pad(x_flat, ((0, B_pad - B), (0, D_pad - D)))
    else:
        x_p = x_flat

    # ---- VMEM / cost bookkeeping ---------------------------------------------
    dbl = 2  # double-buffering
    vmem_need = (dbl * (TB * TK * 4              # x tile (f32)
                        + TK * H0 * 2            # w0 tile (bf16)
                        + TB * OUT_PAD * 4)      # output block
                 + dbl * (H0 * 4 + H0 * H1 * 4 + H1 * 4
                          + H1 * OUT_PAD * 4 + OUT_PAD * 4)   # residents
                 + TB * H0 * 4)                  # accumulator scratch
    cap = _vmem_capacity_bytes()
    vmem_limit = int(min(max(2 * vmem_need, 16 * 2**20), int(0.75 * cap)))

    flops = 2 * B_pad * (D_pad * H0 + H0 * H1 + H1 * n_params)
    bytes_accessed = (x_p.size * 4 + w0_p.size * 2
                      + (b0.size + w1.size + b1.size) * 4
                      + (w2_p.size + b2_p.size) * 4
                      + B_pad * OUT_PAD * 4)
    cost = pl.CostEstimate(flops=flops, transcendentals=0,
                           bytes_accessed=bytes_accessed)

    out_padded = pl.pallas_call(
        lochead_kernel,
        out_shape=jax.ShapeDtypeStruct((B_pad, OUT_PAD), jnp.float32),
        grid_spec=pltpu.PrefetchScalarGridSpec(
            num_scalar_prefetch=0,
            grid=grid,
            in_specs=[
                pl.BlockSpec((TB, TK), lambda i, k: (i, k)),       # x tile
                pl.BlockSpec((TK, H0), lambda i, k: (k, 0)),       # w0 tile
                pl.BlockSpec((1, H0), lambda i, k: (0, 0)),        # b0
                pl.BlockSpec((H0, H1), lambda i, k: (0, 0)),       # w1
                pl.BlockSpec((1, H1), lambda i, k: (0, 0)),        # b1
                pl.BlockSpec((H1, OUT_PAD), lambda i, k: (0, 0)),  # w2 (padded)
                pl.BlockSpec((1, OUT_PAD), lambda i, k: (0, 0)),   # b2 (padded)
            ],
            out_specs=pl.BlockSpec((TB, OUT_PAD), lambda i, k: (i, 0)),
            scratch_shapes=[pltpu.VMEM((TB, H0), jnp.float32)],
        ),
        compiler_params=pltpu.CompilerParams(
            dimension_semantics=("parallel", "arbitrary"),
            vmem_limit_bytes=vmem_limit,
        ),
        cost_estimate=cost,
    )(x_p, w0_p, b0, w1, b1, w2_p, b2_p)

    return out_padded[:B, :n_params]


def _reference_forward(x, params):
    """Plain-JAX reference using the same bf16-input / f32-accum first matmul."""
    w0, b0, w1, b1, w2, b2 = params
    xs = x.reshape(x.shape[0], -1)
    h0 = _leaky_relu(
        jnp.dot(xs.astype(jnp.bfloat16), w0.astype(jnp.bfloat16),
                preferred_element_type=jnp.float32) + b0)
    h1 = _leaky_relu(jnp.dot(h0, w1, preferred_element_type=jnp.float32) + b1)
    return jnp.dot(h1, w2, preferred_element_type=jnp.float32) + b2


if __name__ == "__main__":
    mode = "affine"
    B, C, H, W = 2, 4, 16, 16
    feature_dim = C * H * W  # 1024

    key = jax.random.PRNGKey(0)
    kx, kp, kw2 = jax.random.split(key, 3)
    x = jax.random.normal(kx, (B, C, H, W), jnp.float32)
    params = make_loc_head_params(mode, feature_dim, kp)

    # 1) PyTorch-init state (w2 = 0, b2 = identity tensor)
    prepped = prepare_loc_head_params(params)
    out = loc_head_forward(x, prepped)
    jax.block_until_ready(out)
    ref = _reference_forward(x, params)
    assert out.shape == (B, N_PARAMS[mode]), out.shape
    assert jnp.allclose(out, ref, atol=1e-3, rtol=1e-3), "mismatch (init params)"

    # 2) Non-zero final layer so the third matmul's arithmetic is exercised too.
    w0, b0, w1, b1, w2, b2 = params
    w2_nz = jax.random.normal(kw2, w2.shape, jnp.float32) * 0.1
    params_nz = (w0, b0, w1, b1, w2_nz, b2)
    prepped_nz = prepare_loc_head_params(params_nz)
    out_nz = loc_head_forward(x, prepped_nz)
    jax.block_until_ready(out_nz)
    ref_nz = _reference_forward(x, params_nz)
    assert jnp.allclose(out_nz, ref_nz, atol=1e-3, rtol=1e-3), \
        "mismatch (non-zero w2)"

    print("KERNEL_OK")
</pallas_src>

<mosaic_0001>
module attributes {stable_mosaic.version = 11 : i64} {
  func.func @lochead_kernel(%arg0: i32, %arg1: i32, %arg2: memref<16x1024xf32, #tpu.memory_space<vmem>>, %arg3: memref<1024x128xbf16, #tpu.memory_space<vmem>>, %arg4: memref<1x128xf32, #tpu.memory_space<vmem>>, %arg5: memref<128x64xf32, #tpu.memory_space<vmem>>, %arg6: memref<1x64xf32, #tpu.memory_space<vmem>>, %arg7: memref<64x128xf32, #tpu.memory_space<vmem>>, %arg8: memref<1x128xf32, #tpu.memory_space<vmem>>, %arg9: memref<16x128xf32, #tpu.memory_space<vmem>>, %arg10: memref<16x128xf32, #tpu.memory_space<vmem>>) attributes {dimension_semantics = [#tpu.dimension_semantics<parallel>, #tpu.dimension_semantics<arbitrary>], iteration_bounds = array<i64: 1, 1>, scalar_prefetch = 0 : i64, scratch_operands = 1 : i64, tpu.core_type = #tpu.core_type<tc>, window_params = [{transform_indices = @transform_0, window_bounds = array<i64: 16, 1024>}, {transform_indices = @transform_1, window_bounds = array<i64: 1024, 128>}, {pipeline_mode = #tpu.pipeline_mode<synchronous>, transform_indices = @transform_2, window_bounds = array<i64: 1, 128>}, {pipeline_mode = #tpu.pipeline_mode<synchronous>, transform_indices = @transform_3, window_bounds = array<i64: 128, 64>}, {pipeline_mode = #tpu.pipeline_mode<synchronous>, transform_indices = @transform_4, window_bounds = array<i64: 1, 64>}, {pipeline_mode = #tpu.pipeline_mode<synchronous>, transform_indices = @transform_5, window_bounds = array<i64: 64, 128>}, {pipeline_mode = #tpu.pipeline_mode<synchronous>, transform_indices = @transform_6, window_bounds = array<i64: 1, 128>}, {transform_indices = @transform_7, window_bounds = array<i64: 16, 128>}]} {
    %c0_i32 = arith.constant 0 : i32
    %0 = arith.cmpi eq, %arg1, %c0_i32 : i32
    %1 = arith.extui %0 : i1 to i32
    %c0_i32_0 = arith.constant 0 : i32
    %2 = arith.cmpi ne, %1, %c0_i32_0 : i32
    scf.if %2 {
      %c0_10 = arith.constant 0 : index
      %c0_11 = arith.constant 0 : index
      %13 = vector.load %arg4[%c0_10, %c0_11] : memref<1x128xf32, #tpu.memory_space<vmem>>, vector<1x128xf32>
      %14 = vector.shape_cast %13 : vector<1x128xf32> to vector<1x128xf32>
      %15 = vector.broadcast %14 : vector<1x128xf32> to vector<16x128xf32>
      %c0_12 = arith.constant 0 : index
      %c0_13 = arith.constant 0 : index
      %16 = vector.load %arg10[%c0_12, %c0_13] : memref<16x128xf32, #tpu.memory_space<vmem>>, vector<16x128xf32>
      tpu.vector_store %arg10[%c0_12, %c0_13], %15 {strides = array<i32>} : memref<16x128xf32, #tpu.memory_space<vmem>>, vector<16x128xf32>,
    } else {
    }
    %c0 = arith.constant 0 : index
    %c0_1 = arith.constant 0 : index
    %3 = vector.load %arg10[%c0, %c0_1] : memref<16x128xf32, #tpu.memory_space<vmem>>, vector<16x128xf32>
    %c0_2 = arith.constant 0 : index
    %c0_3 = arith.constant 0 : index
    %4 = vector.load %arg2[%c0_2, %c0_3] : memref<16x1024xf32, #tpu.memory_space<vmem>>, vector<16x1024xf32>
    %5 = arith.truncf %4 : vector<16x1024xf32> to vector<16x1024xbf16>
    %c0_4 = arith.constant 0 : index
    %c0_5 = arith.constant 0 : index
    %6 = vector.load %arg3[%c0_4, %c0_5] : memref<1024x128xbf16, #tpu.memory_space<vmem>>, vector<1024x128xbf16>
    %cst = arith.constant dense<0.000000e+00> : vector<16x128xf32>
    %7 = tpu.matmul %5, %6, %cst {dimension_numbers = #tpu.dot_dimension_numbers<[1], [0], [0], [1], [0, 0, 1, 1], [], []>} : vector<16x1024xbf16>, vector<1024x128xbf16>, vector<16x128xf32> -> vector<16x128xf32>
    %8 = arith.addf %3, %7 : vector<16x128xf32>
    %c0_6 = arith.constant 0 : index
    %c0_7 = arith.constant 0 : index
    %9 = vector.load %arg10[%c0_6, %c0_7] : memref<16x128xf32, #tpu.memory_space<vmem>>, vector<16x128xf32>
    tpu.vector_store %arg10[%c0_6, %c0_7], %8 {strides = array<i32>} : memref<16x128xf32, #tpu.memory_space<vmem>>, vector<16x128xf32>,
    %c0_i32_8 = arith.constant 0 : i32
    %10 = arith.cmpi eq, %arg1, %c0_i32_8 : i32
    %11 = arith.extui %10 : i1 to i32
    %c0_i32_9 = arith.constant 0 : i32
    %12 = arith.cmpi ne, %11, %c0_i32_9 : i32
    scf.if %12 {
      %c0_10 = arith.constant 0 : index
      %c0_11 = arith.constant 0 : index
      %13 = vector.load %arg10[%c0_10, %c0_11] : memref<16x128xf32, #tpu.memory_space<vmem>>, vector<16x128xf32>
      %cst_12 = arith.constant 0.000000e+00 : f32
      %14 = vector.broadcast %cst_12 : f32 to vector<16x128xf32>
      %15 = arith.cmpf ogt, %13, %14 : vector<16x128xf32>
      %cst_13 = arith.constant 0.00999999977 : f32
      %16 = vector.broadcast %cst_13 : f32 to vector<16x128xf32>
      %17 = arith.mulf %16, %13 : vector<16x128xf32>
      %18 = arith.select %15, %13, %17 : vector<16x128xi1>, vector<16x128xf32>
      %c0_14 = arith.constant 0 : index
      %c0_15 = arith.constant 0 : index
      %19 = vector.load %arg5[%c0_14, %c0_15] : memref<128x64xf32, #tpu.memory_space<vmem>>, vector<128x64xf32>
      %cst_16 = arith.constant dense<0.000000e+00> : vector<16x64xf32>
      %20 = tpu.matmul %18, %19, %cst_16 {dimension_numbers = #tpu.dot_dimension_numbers<[1], [0], [0], [1], [0, 0, 1, 1], [], []>} : vector<16x128xf32>, vector<128x64xf32>, vector<16x64xf32> -> vector<16x64xf32>
      %c0_17 = arith.constant 0 : index
      %c0_18 = arith.constant 0 : index
      %21 = vector.load %arg6[%c0_17, %c0_18] : memref<1x64xf32, #tpu.memory_space<vmem>>, vector<1x64xf32>
      %22 = vector.broadcast %21 : vector<1x64xf32> to vector<16x64xf32>
      %23 = arith.addf %20, %22 : vector<16x64xf32>
      %cst_19 = arith.constant 0.000000e+00 : f32
      %24 = vector.broadcast %cst_19 : f32 to vector<16x64xf32>
      %25 = arith.cmpf ogt, %23, %24 : vector<16x64xf32>
      %cst_20 = arith.constant 0.00999999977 : f32
      %26 = vector.broadcast %cst_20 : f32 to vector<16x64xf32>
      %27 = arith.mulf %26, %23 : vector<16x64xf32>
      %28 = arith.select %25, %23, %27 : vector<16x64xi1>, vector<16x64xf32>
      %c0_21 = arith.constant 0 : index
      %c0_22 = arith.constant 0 : index
      %29 = vector.load %arg7[%c0_21, %c0_22] : memref<64x128xf32, #tpu.memory_space<vmem>>, vector<64x128xf32>
      %cst_23 = arith.constant dense<0.000000e+00> : vector<16x128xf32>
      %30 = tpu.matmul %28, %29, %cst_23 {dimension_numbers = #tpu.dot_dimension_numbers<[1], [0], [0], [1], [0, 0, 1, 1], [], []>} : vector<16x64xf32>, vector<64x128xf32>, vector<16x128xf32> -> vector<16x128xf32>
      %c0_24 = arith.constant 0 : index
      %c0_25 = arith.constant 0 : index
      %31 = vector.load %arg8[%c0_24, %c0_25] : memref<1x128xf32, #tpu.memory_space<vmem>>, vector<1x128xf32>
      %32 = vector.broadcast %31 : vector<1x128xf32> to vector<16x128xf32>
      %33 = arith.addf %30, %32 : vector<16x128xf32>
      %c0_26 = arith.constant 0 : index
      %c0_27 = arith.constant 0 : index
      %34 = vector.load %arg9[%c0_26, %c0_27] : memref<16x128xf32, #tpu.memory_space<vmem>>, vector<16x128xf32>
      tpu.vector_store %arg9[%c0_26, %c0_27], %33 {strides = array<i32>} : memref<16x128xf32, #tpu.memory_space<vmem>>, vector<16x128xf32>,
    } else {
    }
    return
  }
  func.func @transform_0(%arg0: i32, %arg1: i32) -> (i32, i32) {
    %c0_i32 = arith.constant 0 : i32
    return %arg0, %arg1 : i32, i32
  }
  func.func @transform_1(%arg0: i32, %arg1: i32) -> (i32, i32) {
    %c0_i32 = arith.constant 0 : i32
    %c0_i32_0 = arith.constant 0 : i32
    return %arg1, %c0_i32 : i32, i32
  }
  func.func @transform_2(%arg0: i32, %arg1: i32) -> (i32, i32) {
    %c0_i32 = arith.constant 0 : i32
    %c0_i32_0 = arith.constant 0 : i32
    %c0_i32_1 = arith.constant 0 : i32
    return %c0_i32, %c0_i32_0 : i32, i32
  }
  func.func @transform_3(%arg0: i32, %arg1: i32) -> (i32, i32) {
    %c0_i32 = arith.constant 0 : i32
    %c0_i32_0 = arith.constant 0 : i32
    %c0_i32_1 = arith.constant 0 : i32
    return %c0_i32, %c0_i32_0 : i32, i32
  }
  func.func @transform_4(%arg0: i32, %arg1: i32) -> (i32, i32) {
    %c0_i32 = arith.constant 0 : i32
    %c0_i32_0 = arith.constant 0 : i32
    %c0_i32_1 = arith.constant 0 : i32
    return %c0_i32, %c0_i32_0 : i32, i32
  }
  func.func @transform_5(%arg0: i32, %arg1: i32) -> (i32, i32) {
    %c0_i32 = arith.constant 0 : i32
    %c0_i32_0 = arith.constant 0 : i32
    %c0_i32_1 = arith.constant 0 : i32
    return %c0_i32, %c0_i32_0 : i32, i32
  }
  func.func @transform_6(%arg0: i32, %arg1: i32) -> (i32, i32) {
    %c0_i32 = arith.constant 0 : i32
    %c0_i32_0 = arith.constant 0 : i32
    %c0_i32_1 = arith.constant 0 : i32
    return %c0_i32, %c0_i32_0 : i32, i32
  }
  func.func @transform_7(%arg0: i32, %arg1: i32) -> (i32, i32) {
    %c0_i32 = arith.constant 0 : i32
    %c0_i32_0 = arith.constant 0 : i32
    return %arg0, %c0_i32 : i32, i32
  }
}

</mosaic_0001>

<llo_original>
// kernel: tpu_custom_call.1
$region0: #{tpu_custom_call.1}
  #allocation0 [shape = 'u32[]', space=smem, size = 0x4, offset = 0x4, fixed_abs, tag = 'smem constant byte address 0x4 - core index']
  #allocation1 [shape = 'u32[72,128]{1,0:T(1,128)}', space=vmem, size = 0x9000, scoped, tag = 'internal scratch']
  #allocation2 [shape = 'f32[16,128]{1,0:T(8,128)}', space=vmem, size = 0x2000, scoped, tag = 'scratch operand']
  %s0 = inlined_call_operand.vmem [shape: f32[16,1024], index: 0, kind: input, shape index: {}]
  %s1 = inlined_call_operand.hbm [shape: bf16[1024,128], index: 1, kind: input, shape index: {}]
  %s2 = inlined_call_operand.hbm [shape: f32[1,128], index: 2, kind: input, shape index: {}]
  %s3 = inlined_call_operand.vmem [shape: f32[128,64], index: 3, kind: input, shape index: {}]
  %s4 = inlined_call_operand.vmem [shape: f32[1,64], index: 4, kind: input, shape index: {}]
  %s5 = inlined_call_operand.vmem [shape: f32[64,128], index: 5, kind: input, shape index: {}]
  %s6 = inlined_call_operand.vmem [shape: f32[1,128], index: 6, kind: input, shape index: {}]
  %s7 = inlined_call_operand.hbm [shape: f32[16,128], index: 7, kind: output, shape index: {}]
  %s8 = sld [smem:[#allocation0]]
  $region54: #{tpu_custom_call.1} parent=0
    _
  %s10 = ssub.s32 1, %s8
  %s11 = scalar_select 0, %s10, %s8
  $region1: #{tpu_custom_call.1} parent=0
    #allocation3 [shape = 'u8[262144]{0}', space=vmem, size = 0x40000, scoped, tag = 'input window, operand 1, single buffered']
    #allocation4 [shape = 's32[1]{0}', space=sflag, size = 0x4, scoped, tag = 'scoped memory for tpu_custom_call.1']
    #allocation5 [shape = 's32[1]{0}', space=sflag, size = 0x4, scoped, tag = 'scoped memory for tpu_custom_call.1']
    #allocation6 [shape = 'u8[512]{0}', space=vmem, size = 0x400, scoped, tag = 'input window, operand 2, single buffered']
    #allocation7 [shape = 's32[1]{0}', space=sflag, size = 0x4, scoped, tag = 'scoped memory for tpu_custom_call.1']
    #allocation8 [shape = 'u8[8192]{0}', space=vmem, size = 0x2000, scoped, tag = 'output window, operand 0, single buffered']
    %12 = vsyncpa [#allocation4], 0
    %13 = vsyncpa [#allocation7], 0
    %14 = vsyncpa [#allocation5], 0
    // Predicated region
    $region2: #{tpu_custom_call.1} parent=1 // pred_check
      _
    $region3: #{tpu_custom_call.1} parent=1 // pred_check_branch
      %16 = sbr.rel (0) target = $region5
    $region4: #{tpu_custom_call.1} parent=1 // pred_region
      _
    $region5: #{tpu_custom_call.1} parent=1 // pred_fallthru
      _
    // Predicated region
    $region6: #{tpu_custom_call.1} parent=1 // pred_check
      _
    $region7: #{tpu_custom_call.1} parent=1 // pred_check_branch
      %18 = sbr.rel (0) target = $region9
    $region8: #{tpu_custom_call.1} parent=1 // pred_region
      %20 = vsyncadd [#allocation4], 0
      %s21 = sshll.u32 %s1, 4
      %s22 = int_to_ptr.hbm [resolvable:$true] %s21
      %s23 = sshll.u32 [#allocation3], 4
      %s24 = int_to_ptr.vmem [resolvable:$true] %s23
      %29 = dma.hbm_to_vmem [thread:$0]  %s22, 8192, %s24, [#allocation4], 64, 64, 4
    $region9: #{tpu_custom_call.1} parent=1 // pred_fallthru
      _
    // Predicated region
    $region10: #{tpu_custom_call.1} parent=1 // pred_check
      _
    $region11: #{tpu_custom_call.1} parent=1 // pred_check_branch
      %31 = sbr.rel (0) target = $region13
    $region12: #{tpu_custom_call.1} parent=1 // pred_region
      %33 = vsyncadd [#allocation7], 0
      %s35 = sshll.u32 %s2, 4
      %s36 = int_to_ptr.hbm [resolvable:$true] %s35
      %s37 = sshll.u32 [#allocation6], 4
      %s38 = int_to_ptr.vmem [resolvable:$true] %s37
      %40 = dma.hbm_to_vmem [thread:$0]  %s36, 16, %s38, [#allocation7]
    $region13: #{tpu_custom_call.1} parent=1 // pred_fallthru
      _
    // Predicated region
    $region14: #{tpu_custom_call.1} parent=1 // pred_check
      _
    $region15: #{tpu_custom_call.1} parent=1 // pred_check_branch
      %42 = sbr.rel (0) target = $region17
    $region16: #{tpu_custom_call.1} parent=1 // pred_region
      _
    $region17: #{tpu_custom_call.1} parent=1 // pred_fallthru
      _
    // Predicated region
    $region18: #{tpu_custom_call.1} parent=1 // pred_check
      _
    $region19: #{tpu_custom_call.1} parent=1 // pred_check_branch
      %44 = sbr.rel (0) target = $region21
    $region20: #{tpu_custom_call.1} parent=1 // pred_region
      _
    $region21: #{tpu_custom_call.1} parent=1 // pred_fallthru
      _
    // Predicated region
    $region22: #{tpu_custom_call.1} parent=1 // pred_check
      _
    $region23: #{tpu_custom_call.1} parent=1 // pred_check_branch
      %46 = sbr.rel (0) target = $region25
    $region24: #{tpu_custom_call.1} parent=1 // pred_region
      _
    $region25: #{tpu_custom_call.1} parent=1 // pred_fallthru
      _
    // Predicated region
    $region26: #{tpu_custom_call.1} parent=1 // pred_check
      _
    $region27: #{tpu_custom_call.1} parent=1 // pred_check_branch
      %48 = sbr.rel (0) target = $region29
    $region28: #{tpu_custom_call.1} parent=1 // pred_region
      _
    $region29: #{tpu_custom_call.1} parent=1 // pred_fallthru
      _
    // Predicated region
    $region30: #{tpu_custom_call.1} parent=1 // pred_check
      _
    $region31: #{tpu_custom_call.1} parent=1 // pred_check_branch
      %50 = sbr.rel (0) target = $region33
    $region32: #{tpu_custom_call.1} parent=1 // pred_region
      %52 = dma.done [#allocation4], 8192
    $region33: #{tpu_custom_call.1} parent=1 // pred_fallthru
      _
    // Predicated region
    $region34: #{tpu_custom_call.1} parent=1 // pred_check
      _
    $region35: #{tpu_custom_call.1} parent=1 // pred_check_branch
      %54 = sbr.rel (0) target = $region37
    $region36: #{tpu_custom_call.1} parent=1 // pred_region
      %56 = dma.done [#allocation7], 16
    $region37: #{tpu_custom_call.1} parent=1 // pred_fallthru
      _
    %p57 = scmp.eq.s32.totalorder 0, 0
    // Predicated region
    $region38: #{tpu_custom_call.1} parent=1 // pred_check
      %p58 = pneg %p57
    $region39: #{tpu_custom_call.1} parent=1 // pred_check_branch
      %60 = sbr.rel (%p58) target = $region41
    $region40: #{tpu_custom_call.1} parent=1 // pred_region
      %v61 = vld [vmem:[#allocation6] sm:$0x1]
      %v63 = vperm.slane %v61, 0
      %65 = vst [vmem:[#allocation2] sm:$0xff] %v63
      %66 = vst [vmem:[#allocation2 + $0x8] sm:$0xff] %v63
    $region41: #{tpu_custom_call.1} parent=1 // pred_fallthru
      _
    %v67 = vld [vmem:[#allocation2] sm:$0xff]
    %v68 = vld [vmem:[#allocation2 + $0x8] sm:$0xff]
    %v69 = vld [vmem:[%s0] sm:$0xff]
    %v70 = vld [vmem:[%s0 + $0x8] sm:$0xff]
    %v71 = vld [vmem:[%s0 + $0x10] sm:$0xff]
    %v72 = vld [vmem:[%s0 + $0x18] sm:$0xff]
    %v73 = vld [vmem:[%s0 + $0x20] sm:$0xff]
    %v74 = vld [vmem:[%s0 + $0x28] sm:$0xff]
    %v75 = vld [vmem:[%s0 + $0x30] sm:$0xff]
    %v76 = vld [vmem:[%s0 + $0x38] sm:$0xff]
    %v77 = vld [vmem:[%s0 + $0x40] sm:$0xff]
    %v78 = vld [vmem:[%s0 + $0x48] sm:$0xff]
    %v79 = vld [vmem:[%s0 + $0x50] sm:$0xff]
    %v80 = vld [vmem:[%s0 + $0x58] sm:$0xff]
    %v81 = vld [vmem:[%s0 + $0x60] sm:$0xff]
    %v82 = vld [vmem:[%s0 + $0x68] sm:$0xff]
    %v83 = vld [vmem:[%s0 + $0x70] sm:$0xff]
    %v84 = vld [vmem:[%s0 + $0x78] sm:$0xff]
    %v85 = vpack.c.bf16 %v77, %v69
    %v86 = vpack.c.bf16 %v78, %v70
    %v87 = vpack.c.bf16 %v79, %v71
    %v88 = vpack.c.bf16 %v80, %v72
    %v89 = vpack.c.bf16 %v81, %v73
    %v90 = vpack.c.bf16 %v82, %v74
    %v91 = vpack.c.bf16 %v83, %v75
    %v92 = vpack.c.bf16 %v84, %v76
    %v93 = vld [vmem:[#allocation3] sm:$0xf]
    %v94 = vld [vmem:[#allocation3 + $0x4] sm:$0xf]
    %v95 = vld [vmem:[#allocation3 + $0x8] sm:$0xf]
    %v96 = vld [vmem:[#allocation3 + $0xc] sm:$0xf]
    %v97 = vld [vmem:[#allocation3 + $0x10] sm:$0xf]
    %v98 = vld [vmem:[#allocation3 + $0x14] sm:$0xf]
    %v99 = vld [vmem:[#allocation3 + $0x18] sm:$0xf]
    %v100 = vld [vmem:[#allocation3 + $0x1c] sm:$0xf]
    %v101 = vld [vmem:[#allocation3 + $0x20] sm:$0xf]
    %v102 = vld [vmem:[#allocation3 + $0x24] sm:$0xf]
    %v103 = vld [vmem:[#allocation3 + $0x28] sm:$0xf]
    %v104 = vld [vmem:[#allocation3 + $0x2c] sm:$0xf]
    %v105 = vld [vmem:[#allocation3 + $0x30] sm:$0xf]
    %v106 = vld [vmem:[#allocation3 + $0x34] sm:$0xf]
    %v107 = vld [vmem:[#allocation3 + $0x38] sm:$0xf]
    %v108 = vld [vmem:[#allocation3 + $0x3c] sm:$0xf]
    %v109 = vld [vmem:[#allocation3 + $0x40] sm:$0xf]
    %v110 = vld [vmem:[#allocation3 + $0x44] sm:$0xf]
    %v111 = vld [vmem:[#allocation3 + $0x48] sm:$0xf]
    %v112 = vld [vmem:[#allocation3 + $0x4c] sm:$0xf]
    %v113 = vld [vmem:[#allocation3 + $0x50] sm:$0xf]
    %v114 = vld [vmem:[#allocation3 + $0x54] sm:$0xf]
    %v115 = vld [vmem:[#allocation3 + $0x58] sm:$0xf]
    %v116 = vld [vmem:[#allocation3 + $0x5c] sm:$0xf]
    %v117 = vld [vmem:[#allocation3 + $0x60] sm:$0xf]
    %v118 = vld [vmem:[#allocation3 + $0x64] sm:$0xf]
    %v119 = vld [vmem:[#allocation3 + $0x68] sm:$0xf]
    %v120 = vld [vmem:[#allocation3 + $0x6c] sm:$0xf]
    %v121 = vld [vmem:[#allocation3 + $0x70] sm:$0xf]
    %v122 = vld [vmem:[#allocation3 + $0x74] sm:$0xf]
    %v123 = vld [vmem:[#allocation3 + $0x78] sm:$0xf]
    %v124 = vld [vmem:[#allocation3 + $0x7c] sm:$0xf]
    %v125 = vld [vmem:[#allocation3 + $0x80] sm:$0xf]
    %v126 = vld [vmem:[#allocation3 + $0x84] sm:$0xf]
    %v127 = vld [vmem:[#allocation3 + $0x88] sm:$0xf]
    %v128 = vld [vmem:[#allocation3 + $0x8c] sm:$0xf]
    %v129 = vld [vmem:[#allocation3 + $0x90] sm:$0xf]
    %v130 = vld [vmem:[#allocation3 + $0x94] sm:$0xf]
    %v131 = vld [vmem:[#allocation3 + $0x98] sm:$0xf]
    %v132 = vld [vmem:[#allocation3 + $0x9c] sm:$0xf]
    %v133 = vld [vmem:[#allocation3 + $0xa0] sm:$0xf]
    %v134 = vld [vmem:[#allocation3 + $0xa4] sm:$0xf]
    %v135 = vld [vmem:[#allocation3 + $0xa8] sm:$0xf]
    %v136 = vld [vmem:[#allocation3 + $0xac] sm:$0xf]
    %v137 = vld [vmem:[#allocation3 + $0xb0] sm:$0xf]
    %v138 = vld [vmem:[#allocation3 + $0xb4] sm:$0xf]
    %v139 = vld [vmem:[#allocation3 + $0xb8] sm:$0xf]
    %v140 = vld [vmem:[#allocation3 + $0xbc] sm:$0xf]
    %v141 = vld [vmem:[#allocation3 + $0xc0] sm:$0xf]
    %v142 = vld [vmem:[#allocation3 + $0xc4] sm:$0xf]
    %v143 = vld [vmem:[#allocation3 + $0xc8] sm:$0xf]
    %v144 = vld [vmem:[#allocation3 + $0xcc] sm:$0xf]
    %v145 = vld [vmem:[#allocation3 + $0xd0] sm:$0xf]
    %v146 = vld [vmem:[#allocation3 + $0xd4] sm:$0xf]
    %v147 = vld [vmem:[#allocation3 + $0xd8] sm:$0xf]
    %v148 = vld [vmem:[#allocation3 + $0xdc] sm:$0xf]
    %v149 = vld [vmem:[#allocation3 + $0xe0] sm:$0xf]
    %v150 = vld [vmem:[#allocation3 + $0xe4] sm:$0xf]
    %v151 = vld [vmem:[#allocation3 + $0xe8] sm:$0xf]
    %v152 = vld [vmem:[#allocation3 + $0xec] sm:$0xf]
    %v153 = vld [vmem:[#allocation3 + $0xf0] sm:$0xf]
    %v154 = vld [vmem:[#allocation3 + $0xf4] sm:$0xf]
    %v155 = vld [vmem:[#allocation3 + $0xf8] sm:$0xf]
    %v156 = vld [vmem:[#allocation3 + $0xfc] sm:$0xf]
    %v157 = vld [vmem:[#allocation3 + $0x100] sm:$0xf]
    %v158 = vld [vmem:[#allocation3 + $0x104] sm:$0xf]
    %v159 = vld [vmem:[#allocation3 + $0x108] sm:$0xf]
    %v160 = vld [vmem:[#allocation3 + $0x10c] sm:$0xf]
    %v161 = vld [vmem:[#allocation3 + $0x110] sm:$0xf]
    %v162 = vld [vmem:[#allocation3 + $0x114] sm:$0xf]
    %v163 = vld [vmem:[#allocation3 + $0x118] sm:$0xf]
    %v164 = vld [vmem:[#allocation3 + $0x11c] sm:$0xf]
    %v165 = vld [vmem:[#allocation3 + $0x120] sm:$0xf]
    %v166 = vld [vmem:[#allocation3 + $0x124] sm:$0xf]
    %v167 = vld [vmem:[#allocation3 + $0x128] sm:$0xf]
    %v168 = vld [vmem:[#allocation3 + $0x12c] sm:$0xf]
    %v169 = vld [vmem:[#allocation3 + $0x130] sm:$0xf]
    %v170 = vld [vmem:[#allocation3 + $0x134] sm:$0xf]
    %v171 = vld [vmem:[#allocation3 + $0x138] sm:$0xf]
    %v172 = vld [vmem:[#allocation3 + $0x13c] sm:$0xf]
    %v173 = vld [vmem:[#allocation3 + $0x140] sm:$0xf]
    %v174 = vld [vmem:[#allocation3 + $0x144] sm:$0xf]
    %v175 = vld [vmem:[#allocation3 + $0x148] sm:$0xf]
    %v176 = vld [vmem:[#allocation3 + $0x14c] sm:$0xf]
    %v177 = vld [vmem:[#allocation3 + $0x150] sm:$0xf]
    %v178 = vld [vmem:[#allocation3 + $0x154] sm:$0xf]
    %v179 = vld [vmem:[#allocation3 + $0x158] sm:$0xf]
    %v180 = vld [vmem:[#allocation3 + $0x15c] sm:$0xf]
    %v181 = vld [vmem:[#allocation3 + $0x160] sm:$0xf]
    %v182 = vld [vmem:[#allocation3 + $0x164] sm:$0xf]
    %v183 = vld [vmem:[#allocation3 + $0x168] sm:$0xf]
    %v184 = vld [vmem:[#allocation3 + $0x16c] sm:$0xf]
    %v185 = vld [vmem:[#allocation3 + $0x170] sm:$0xf]
    %v186 = vld [vmem:[#allocation3 + $0x174] sm:$0xf]
    %v187 = vld [vmem:[#allocation3 + $0x178] sm:$0xf]
    %v188 = vld [vmem:[#allocation3 + $0x17c] sm:$0xf]
    %v189 = vld [vmem:[#allocation3 + $0x180] sm:$0xf]
    %v190 = vld [vmem:[#allocation3 + $0x184] sm:$0xf]
    %v191 = vld [vmem:[#allocation3 + $0x188] sm:$0xf]
    %v192 = vld [vmem:[#allocation3 + $0x18c] sm:$0xf]
    %v193 = vld [vmem:[#allocation3 + $0x190] sm:$0xf]
    %v194 = vld [vmem:[#allocation3 + $0x194] sm:$0xf]
    %v195 = vld [vmem:[#allocation3 + $0x198] sm:$0xf]
    %v196 = vld [vmem:[#allocation3 + $0x19c] sm:$0xf]
    %v197 = vld [vmem:[#allocation3 + $0x1a0] sm:$0xf]
    %v198 = vld [vmem:[#allocation3 + $0x1a4] sm:$0xf]
    %v199 = vld [vmem:[#allocation3 + $0x1a8] sm:$0xf]
    %v200 = vld [vmem:[#allocation3 + $0x1ac] sm:$0xf]
    %v201 = vld [vmem:[#allocation3 + $0x1b0] sm:$0xf]
    %v202 = vld [vmem:[#allocation3 + $0x1b4] sm:$0xf]
    %v203 = vld [vmem:[#allocation3 + $0x1b8] sm:$0xf]
    %v204 = vld [vmem:[#allocation3 + $0x1bc] sm:$0xf]
    %v205 = vld [vmem:[#allocation3 + $0x1c0] sm:$0xf]
    %v206 = vld [vmem:[#allocation3 + $0x1c4] sm:$0xf]
    %v207 = vld [vmem:[#allocation3 + $0x1c8] sm:$0xf]
    %v208 = vld [vmem:[#allocation3 + $0x1cc] sm:$0xf]
    %v209 = vld [vmem:[#allocation3 + $0x1d0] sm:$0xf]
    %v210 = vld [vmem:[#allocation3 + $0x1d4] sm:$0xf]
    %v211 = vld [vmem:[#allocation3 + $0x1d8] sm:$0xf]
    %v212 = vld [vmem:[#allocation3 + $0x1dc] sm:$0xf]
    %v213 = vld [vmem:[#allocation3 + $0x1e0] sm:$0xf]
    %v214 = vld [vmem:[#allocation3 + $0x1e4] sm:$0xf]
    %v215 = vld [vmem:[#allocation3 + $0x1e8] sm:$0xf]
    %v216 = vld [vmem:[#allocation3 + $0x1ec] sm:$0xf]
    %v217 = vld [vmem:[#allocation3 + $0x1f0] sm:$0xf]
    %v218 = vld [vmem:[#allocation3 + $0x1f4] sm:$0xf]
    %v219 = vld [vmem:[#allocation3 + $0x1f8] sm:$0xf]
    %v220 = vld [vmem:[#allocation3 + $0x1fc] sm:$0xf]
    %v349 = vunpack.c.l.b16 %v93
    %v350 = vunpack.c.l.b16 %v94
    %v351 = vunpack.c.l.b16 %v95
    %v352 = vunpack.c.l.b16 %v96
    %v353 = vunpack.c.l.b16 %v97
    %v354 = vunpack.c.l.b16 %v98
    %v355 = vunpack.c.l.b16 %v99
    %v356 = vunpack.c.l.b16 %v100
    %v357 = vunpack.c.l.b16 %v101
    %v358 = vunpack.c.l.b16 %v102
    %v359 = vunpack.c.l.b16 %v103
    %v360 = vunpack.c.l.b16 %v104
    %v361 = vunpack.c.l.b16 %v105
    %v362 = vunpack.c.l.b16 %v106
    %v363 = vunpack.c.l.b16 %v107
    %v364 = vunpack.c.l.b16 %v108
    %v365 = vunpack.c.l.b16 %v109
    %v366 = vunpack.c.l.b16 %v110
    %v367 = vunpack.c.l.b16 %v111
    %v368 = vunpack.c.l.b16 %v112
    %v369 = vunpack.c.l.b16 %v113
    %v370 = vunpack.c.l.b16 %v114
    %v371 = vunpack.c.l.b16 %v115
    %v372 = vunpack.c.l.b16 %v116
    %v373 = vunpack.c.l.b16 %v117
    %v374 = vunpack.c.l.b16 %v118
    %v375 = vunpack.c.l.b16 %v119
    %v376 = vunpack.c.l.b16 %v120
    %v377 = vunpack.c.l.b16 %v121
    %v378 = vunpack.c.l.b16 %v122
    %v379 = vunpack.c.l.b16 %v123
    %v380 = vunpack.c.l.b16 %v124
    %v381 = vunpack.c.l.b16 %v125
    %v382 = vunpack.c.l.b16 %v126
    %v383 = vunpack.c.l.b16 %v127
    %v384 = vunpack.c.l.b16 %v128
    %v385 = vunpack.c.l.b16 %v129
    %v386 = vunpack.c.l.b16 %v130
    %v387 = vunpack.c.l.b16 %v131
    %v388 = vunpack.c.l.b16 %v132
    %v389 = vunpack.c.l.b16 %v133
    %v390 = vunpack.c.l.b16 %v134
    %v391 = vunpack.c.l.b16 %v135
    %v392 = vunpack.c.l.b16 %v136
    %v393 = vunpack.c.l.b16 %v137
    %v394 = vunpack.c.l.b16 %v138
    %v395 = vunpack.c.l.b16 %v139
    %v396 = vunpack.c.l.b16 %v140
    %v397 = vunpack.c.l.b16 %v141
    %v398 = vunpack.c.l.b16 %v142
    %v399 = vunpack.c.l.b16 %v143
    %v400 = vunpack.c.l.b16 %v144
    %v401 = vunpack.c.l.b16 %v145
    %v402 = vunpack.c.l.b16 %v146
    %v403 = vunpack.c.l.b16 %v147
    %v404 = vunpack.c.l.b16 %v148
    %v405 = vunpack.c.l.b16 %v149
    %v406 = vunpack.c.l.b16 %v150
    %v407 = vunpack.c.l.b16 %v151
    %v408 = vunpack.c.l.b16 %v152
    %v409 = vunpack.c.l.b16 %v153
    %v410 = vunpack.c.l.b16 %v154
    %v411 = vunpack.c.l.b16 %v155
    %v412 = vunpack.c.l.b16 %v156
    %v413 = vunpack.c.l.b16 %v157
    %v414 = vunpack.c.l.b16 %v158
    %v415 = vunpack.c.l.b16 %v159
    %v416 = vunpack.c.l.b16 %v160
    %v417 = vunpack.c.l.b16 %v161
    %v418 = vunpack.c.l.b16 %v162
    %v419 = vunpack.c.l.b16 %v163
    %v420 = vunpack.c.l.b16 %v164
    %v421 = vunpack.c.l.b16 %v165
    %v422 = vunpack.c.l.b16 %v166
    %v423 = vunpack.c.l.b16 %v167
    %v424 = vunpack.c.l.b16 %v168
    %v425 = vunpack.c.l.b16 %v169
    %v426 = vunpack.c.l.b16 %v170
    %v427 = vunpack.c.l.b16 %v171
    %v428 = vunpack.c.l.b16 %v172
    %v429 = vunpack.c.l.b16 %v173
    %v430 = vunpack.c.l.b16 %v174
    %v431 = vunpack.c.l.b16 %v175
    %v432 = vunpack.c.l.b16 %v176
    %v433 = vunpack.c.l.b16 %v177
    %v434 = vunpack.c.l.b16 %v178
    %v435 = vunpack.c.l.b16 %v179
    %v436 = vunpack.c.l.b16 %v180
    %v437 = vunpack.c.l.b16 %v181
    %v438 = vunpack.c.l.b16 %v182
    %v439 = vunpack.c.l.b16 %v183
    %v440 = vunpack.c.l.b16 %v184
    %v441 = vunpack.c.l.b16 %v185
    %v442 = vunpack.c.l.b16 %v186
    %v443 = vunpack.c.l.b16 %v187
    %v444 = vunpack.c.l.b16 %v188
    %v445 = vunpack.c.l.b16 %v189
    %v446 = vunpack.c.l.b16 %v190
    %v447 = vunpack.c.l.b16 %v191
    %v448 = vunpack.c.l.b16 %v192
    %v449 = vunpack.c.l.b16 %v193
    %v450 = vunpack.c.l.b16 %v194
    %v451 = vunpack.c.l.b16 %v195
    %v452 = vunpack.c.l.b16 %v196
    %v453 = vunpack.c.l.b16 %v197
    %v454 = vunpack.c.l.b16 %v198
    %v455 = vunpack.c.l.b16 %v199
    %v456 = vunpack.c.l.b16 %v200
    %v457 = vunpack.c.l.b16 %v201
    %v458 = vunpack.c.l.b16 %v202
    %v459 = vunpack.c.l.b16 %v203
    %v460 = vunpack.c.l.b16 %v204
    %v461 = vunpack.c.l.b16 %v205
    %v462 = vunpack.c.l.b16 %v206
    %v463 = vunpack.c.l.b16 %v207
    %v464 = vunpack.c.l.b16 %v208
    %v465 = vunpack.c.l.b16 %v209
    %v466 = vunpack.c.l.b16 %v210
    %v467 = vunpack.c.l.b16 %v211
    %v468 = vunpack.c.l.b16 %v212
    %v469 = vunpack.c.l.b16 %v213
    %v470 = vunpack.c.l.b16 %v214
    %v471 = vunpack.c.l.b16 %v215
    %v472 = vunpack.c.l.b16 %v216
    %v473 = vunpack.c.l.b16 %v217
    %v474 = vunpack.c.l.b16 %v218
    %v475 = vunpack.c.l.b16 %v219
    %v476 = vunpack.c.l.b16 %v220
    %v477 = vpack.c.b16 %v350, %v349
    %v478 = vpack.c.b16 %v352, %v351
    %v479 = vpack.c.b16 %v354, %v353
    %v480 = vpack.c.b16 %v356, %v355
    %v481 = vpack.c.b16 %v358, %v357
    %v482 = vpack.c.b16 %v360, %v359
    %v483 = vpack.c.b16 %v362, %v361
    %v484 = vpack.c.b16 %v364, %v363
    %v485 = vpack.c.b16 %v366, %v365
    %v486 = vpack.c.b16 %v368, %v367
    %v487 = vpack.c.b16 %v370, %v369
    %v488 = vpack.c.b16 %v372, %v371
    %v489 = vpack.c.b16 %v374, %v373
    %v490 = vpack.c.b16 %v376, %v375
    %v491 = vpack.c.b16 %v378, %v377
    %v492 = vpack.c.b16 %v380, %v379
    %v493 = vpack.c.b16 %v382, %v381
    %v494 = vpack.c.b16 %v384, %v383
    %v495 = vpack.c.b16 %v386, %v385
    %v496 = vpack.c.b16 %v388, %v387
    %v497 = vpack.c.b16 %v390, %v389
    %v498 = vpack.c.b16 %v392, %v391
    %v499 = vpack.c.b16 %v394, %v393
    %v500 = vpack.c.b16 %v396, %v395
    %v501 = vpack.c.b16 %v398, %v397
    %v502 = vpack.c.b16 %v400, %v399
    %v503 = vpack.c.b16 %v402, %v401
    %v504 = vpack.c.b16 %v404, %v403
    %v505 = vpack.c.b16 %v406, %v405
    %v506 = vpack.c.b16 %v408, %v407
    %v507 = vpack.c.b16 %v410, %v409
    %v508 = vpack.c.b16 %v412, %v411
    %v509 = vpack.c.b16 %v414, %v413
    %v510 = vpack.c.b16 %v416, %v415
    %v511 = vpack.c.b16 %v418, %v417
    %v512 = vpack.c.b16 %v420, %v419
    %v513 = vpack.c.b16 %v422, %v421
    %v514 = vpack.c.b16 %v424, %v423
    %v515 = vpack.c.b16 %v426, %v425
    %v516 = vpack.c.b16 %v428, %v427
    %v517 = vpack.c.b16 %v430, %v429
    %v518 = vpack.c.b16 %v432, %v431
    %v519 = vpack.c.b16 %v434, %v433
    %v520 = vpack.c.b16 %v436, %v435
    %v521 = vpack.c.b16 %v438, %v437
    %v522 = vpack.c.b16 %v440, %v439
    %v523 = vpack.c.b16 %v442, %v441
    %v524 = vpack.c.b16 %v444, %v443
    %v525 = vpack.c.b16 %v446, %v445
    %v526 = vpack.c.b16 %v448, %v447
    %v527 = vpack.c.b16 %v450, %v449
    %v528 = vpack.c.b16 %v452, %v451
    %v529 = vpack.c.b16 %v454, %v453
    %v530 = vpack.c.b16 %v456, %v455
    %v531 = vpack.c.b16 %v458, %v457
    %v532 = vpack.c.b16 %v460, %v459
    %v533 = vpack.c.b16 %v462, %v461
    %v534 = vpack.c.b16 %v464, %v463
    %v535 = vpack.c.b16 %v466, %v465
    %v536 = vpack.c.b16 %v468, %v467
    %v537 = vpack.c.b16 %v470, %v469
    %v538 = vpack.c.b16 %v472, %v471
    %v539 = vpack.c.b16 %v474, %v473
    %v540 = vpack.c.b16 %v476, %v475
    %605 = vmatpush.bf16.msra.mxu0 %v484
    %606 = vmatpush.bf16.msra.mxu0 %v483
    %607 = vmatpush.bf16.msra.mxu0 %v482
    %608 = vmatpush.bf16.msra.mxu0 %v481
    %609 = vmatpush.bf16.msra.mxu0 %v480
    %610 = vmatpush.bf16.msra.mxu0 %v479
    %611 = vmatpush.bf16.msra.mxu0 %v478
    %612 = vmatpush.bf16.msra.mxu0 %v477
    %613 = vmatmul.bf16.gmra.mxu0 %v85
    %v614 = vpop.f32.mrf.mxu0
    %v615 = vadd.f32 0.0, %v614
    %v616 = vpop.f32.mrf.mxu0
    %v617 = vadd.f32 0.0, %v616
    %618 = vdwg.mxu0
    %619 = vmatpush.bf16.msra.mxu0 %v492
    %620 = vmatpush.bf16.msra.mxu0 %v491
    %621 = vmatpush.bf16.msra.mxu0 %v490
    %622 = vmatpush.bf16.msra.mxu0 %v489
    %623 = vmatpush.bf16.msra.mxu0 %v488
    %624 = vmatpush.bf16.msra.mxu0 %v487
    %625 = vmatpush.bf16.msra.mxu0 %v486
    %626 = vmatpush.bf16.msra.mxu0 %v485
    %627 = vmatmul.bf16.gmra.mxu0 %v86
    %v628 = vpop.f32.mrf.mxu0
    %v629 = vadd.f32 %v615, %v628
    %v630 = vpop.f32.mrf.mxu0
    %v631 = vadd.f32 %v617, %v630
    %632 = vdwg.mxu0
    %633 = vmatpush.bf16.msra.mxu0 %v500
    %634 = vmatpush.bf16.msra.mxu0 %v499
    %635 = vmatpush.bf16.msra.mxu0 %v498
    %636 = vmatpush.bf16.msra.mxu0 %v497
    %637 = vmatpush.bf16.msra.mxu0 %v496
    %638 = vmatpush.bf16.msra.mxu0 %v495
    %639 = vmatpush.bf16.msra.mxu0 %v494
    %640 = vmatpush.bf16.msra.mxu0 %v493
    %641 = vmatmul.bf16.gmra.mxu0 %v87
    %v642 = vpop.f32.mrf.mxu0
    %v643 = vadd.f32 %v629, %v642
    %v644 = vpop.f32.mrf.mxu0
    %v645 = vadd.f32 %v631, %v644
    %646 = vdwg.mxu0
    %647 = vmatpush.bf16.msra.mxu0 %v508
    %648 = vmatpush.bf16.msra.mxu0 %v507
    %649 = vmatpush.bf16.msra.mxu0 %v506
    %650 = vmatpush.bf16.msra.mxu0 %v505
    %651 = vmatpush.bf16.msra.mxu0 %v504
    %652 = vmatpush.bf16.msra.mxu0 %v503
    %653 = vmatpush.bf16.msra.mxu0 %v502
    %654 = vmatpush.bf16.msra.mxu0 %v501
    %655 = vmatmul.bf16.gmra.mxu0 %v88
    %v656 = vpop.f32.mrf.mxu0
    %v657 = vadd.f32 %v643, %v656
    %v658 = vpop.f32.mrf.mxu0
    %v659 = vadd.f32 %v645, %v658
    %660 = vdwg.mxu0
    %661 = vmatpush.bf16.msra.mxu0 %v516
    %662 = vmatpush.bf16.msra.mxu0 %v515
    %663 = vmatpush.bf16.msra.mxu0 %v514
    %664 = vmatpush.bf16.msra.mxu0 %v513
    %665 = vmatpush.bf16.msra.mxu0 %v512
    %666 = vmatpush.bf16.msra.mxu0 %v511
    %667 = vmatpush.bf16.msra.mxu0 %v510
    %668 = vmatpush.bf16.msra.mxu0 %v509
    %669 = vmatmul.bf16.gmra.mxu0 %v89
    %v670 = vpop.f32.mrf.mxu0
    %v671 = vadd.f32 %v657, %v670
    %v672 = vpop.f32.mrf.mxu0
    %v673 = vadd.f32 %v659, %v672
    %674 = vdwg.mxu0
    %675 = vmatpush.bf16.msra.mxu0 %v524
    %676 = vmatpush.bf16.msra.mxu0 %v523
    %677 = vmatpush.bf16.msra.mxu0 %v522
    %678 = vmatpush.bf16.msra.mxu0 %v521
    %679 = vmatpush.bf16.msra.mxu0 %v520
    %680 = vmatpush.bf16.msra.mxu0 %v519
    %681 = vmatpush.bf16.msra.mxu0 %v518
    %682 = vmatpush.bf16.msra.mxu0 %v517
    %683 = vmatmul.bf16.gmra.mxu0 %v90
    %v684 = vpop.f32.mrf.mxu0
    %v685 = vadd.f32 %v671, %v684
    %v686 = vpop.f32.mrf.mxu0
    %v687 = vadd.f32 %v673, %v686
    %688 = vdwg.mxu0
    %689 = vmatpush.bf16.msra.mxu0 %v532
    %690 = vmatpush.bf16.msra.mxu0 %v531
    %691 = vmatpush.bf16.msra.mxu0 %v530
    %692 = vmatpush.bf16.msra.mxu0 %v529
    %693 = vmatpush.bf16.msra.mxu0 %v528
    %694 = vmatpush.bf16.msra.mxu0 %v527
    %695 = vmatpush.bf16.msra.mxu0 %v526
    %696 = vmatpush.bf16.msra.mxu0 %v525
    %697 = vmatmul.bf16.gmra.mxu0 %v91
    %v698 = vpop.f32.mrf.mxu0
    %v699 = vadd.f32 %v685, %v698
    %v700 = vpop.f32.mrf.mxu0
    %v701 = vadd.f32 %v687, %v700
    %702 = vdwg.mxu0
    %703 = vmatpush.bf16.msra.mxu0 %v540
    %704 = vmatpush.bf16.msra.mxu0 %v539
    %705 = vmatpush.bf16.msra.mxu0 %v538
    %706 = vmatpush.bf16.msra.mxu0 %v537
    %707 = vmatpush.bf16.msra.mxu0 %v536
    %708 = vmatpush.bf16.msra.mxu0 %v535
    %709 = vmatpush.bf16.msra.mxu0 %v534
    %710 = vmatpush.bf16.msra.mxu0 %v533
    %711 = vmatmul.bf16.gmra.mxu0 %v92
    %v712 = vpop.f32.mrf.mxu0
    %v713 = vadd.f32 %v699, %v712
    %v714 = vpop.f32.mrf.mxu0
    %v715 = vadd.f32 %v701, %v714
    %716 = vdwg.mxu0
    %v717 = vadd.f32 %v67, %v713
    %v718 = vadd.f32 %v68, %v715
    %719 = vst [vmem:[#allocation2] sm:$0xff] %v717
    %720 = vst [vmem:[#allocation2 + $0x8] sm:$0xff] %v718
    // Predicated region
    $region42: #{tpu_custom_call.1} parent=1 // pred_check
      %p721 = pneg %p57
    $region43: #{tpu_custom_call.1} parent=1 // pred_check_branch
      %723 = sbr.rel (%p721) target = $region45
    $region44: #{tpu_custom_call.1} parent=1 // pred_region
      %v724 = vld [vmem:[#allocation2] sm:$0xff]
      %v725 = vld [vmem:[#allocation2 + $0x8] sm:$0xff]
      %vm726 = vcmp.gt.f32.partialorder %v724, 0.0
      %vm727 = vcmp.gt.f32.partialorder %v725, 0.0
      %v728 = vmul.f32 %v724, 0.01
      %v729 = vmul.f32 %v725, 0.01
      %v730 = vsel %vm726, %v724, %v728
      %v731 = vsel %vm727, %v725, %v729
      %v732 = vld [vmem:[%s3] sm:$0xff]
      %v733 = vld [vmem:[%s3 + $0x8] sm:$0xff]
      %v734 = vld [vmem:[%s3 + $0x10] sm:$0xff]
      %v735 = vld [vmem:[%s3 + $0x18] sm:$0xff]
      %v736 = vld [vmem:[%s3 + $0x20] sm:$0xff]
      %v737 = vld [vmem:[%s3 + $0x28] sm:$0xff]
      %v738 = vld [vmem:[%s3 + $0x30] sm:$0xff]
      %v739 = vld [vmem:[%s3 + $0x38] sm:$0xff]
      %v740 = vld [vmem:[%s3 + $0x40] sm:$0xff]
      %v741 = vld [vmem:[%s3 + $0x48] sm:$0xff]
      %v742 = vld [vmem:[%s3 + $0x50] sm:$0xff]
      %v743 = vld [vmem:[%s3 + $0x58] sm:$0xff]
      %v744 = vld [vmem:[%s3 + $0x60] sm:$0xff]
      %v745 = vld [vmem:[%s3 + $0x68] sm:$0xff]
      %v746 = vld [vmem:[%s3 + $0x70] sm:$0xff]
      %v747 = vld [vmem:[%s3 + $0x78] sm:$0xff]
      %v748 = vld [vmem:[%s4] sm:$0x1]
      %v750 = vperm.slane %v748, 0
      %752 = vmatpush.msra.mxu0 %v747
      %753 = vmatpush.msra.mxu0 %v746
      %754 = vmatpush.msra.mxu0 %v745
      %755 = vmatpush.msra.mxu0 %v744
      %756 = vmatpush.msra.mxu0 %v743
      %757 = vmatpush.msra.mxu0 %v742
      %758 = vmatpush.msra.mxu0 %v741
      %759 = vmatpush.msra.mxu0 %v740
      %760 = vmatpush.msra.mxu0 %v739
      %761 = vmatpush.msra.mxu0 %v738
      %762 = vmatpush.msra.mxu0 %v737
      %763 = vmatpush.msra.mxu0 %v736
      %764 = vmatpush.msra.mxu0 %v735
      %765 = vmatpush.msra.mxu0 %v734
      %766 = vmatpush.msra.mxu0 %v733
      %767 = vmatpush.msra.mxu0 %v732
      %768 = vmatmul.f32.gmra.mxu0 %v730
      %v769 = vpop.f32.mrf.mxu0
      %v770 = vadd.f32 %v750, %v769
      %771 = vmatmul.f32.gmra.mxu0 %v731
      %v772 = vpop.f32.mrf.mxu0
      %v773 = vadd.f32 %v750, %v772
      %774 = vdwg.mxu0
      %vm775 = vcmp.gt.f32.partialorder %v770, 0.0
      %vm776 = vcmp.gt.f32.partialorder %v773, 0.0
      %v777 = vmul.f32 %v770, 0.01
      %v778 = vmul.f32 %v773, 0.01
      %v779 = vsel %vm775, %v770, %v777
      %v780 = vsel %vm776, %v773, %v778
      %v781 = vld [vmem:[%s5] sm:$0xff]
      %v782 = vld [vmem:[%s5 + $0x8] sm:$0xff]
      %v783 = vld [vmem:[%s5 + $0x10] sm:$0xff]
      %v784 = vld [vmem:[%s5 + $0x18] sm:$0xff]
      %v785 = vld [vmem:[%s5 + $0x20] sm:$0xff]
      %v786 = vld [vmem:[%s5 + $0x28] sm:$0xff]
      %v787 = vld [vmem:[%s5 + $0x30] sm:$0xff]
      %v788 = vld [vmem:[%s5 + $0x38] sm:$0xff]
      %v789 = vld [vmem:[%s6] sm:$0x1]
      %v791 = vperm.slane %v789, 0
      %vm793 = vcmask 523264
      %v795 = vsel %vm793, %v779, 0
      %v798 = vsel %vm793, %v780, 0
      %800 = vmatpush.msra.mxu0 0.0
      %801 = vmatpush.msra.mxu0 0.0
      %802 = vmatpush.msra.mxu0 0.0
      %803 = vmatpush.msra.mxu0 0.0
      %804 = vmatpush.msra.mxu0 0.0
      %805 = vmatpush.msra.mxu0 0.0
      %806 = vmatpush.msra.mxu0 0.0
      %807 = vmatpush.msra.mxu0 0.0
      %808 = vmatpush.msra.mxu0 %v788
      %809 = vmatpush.msra.mxu0 %v787
      %810 = vmatpush.msra.mxu0 %v786
      %811 = vmatpush.msra.mxu0 %v785
      %812 = vmatpush.msra.mxu0 %v784
      %813 = vmatpush.msra.mxu0 %v783
      %814 = vmatpush.msra.mxu0 %v782
      %815 = vmatpush.msra.mxu0 %v781
      %816 = vmatmul.f32.gmra.mxu0 %v795
      %v817 = vpop.f32.mrf.mxu0
      %v818 = vadd.f32 %v791, %v817
      %819 = vmatmul.f32.gmra.mxu0 %v798
      %v820 = vpop.f32.mrf.mxu0
      %v821 = vadd.f32 %v791, %v820
      %822 = vdwg.mxu0
      %823 = vst [vmem:[#allocation8] sm:$0xff] %v818
      %824 = vst [vmem:[#allocation8 + $0x8] sm:$0xff] %v821
    $region45: #{tpu_custom_call.1} parent=1 // pred_fallthru
      _
    // Predicated region
    $region46: #{tpu_custom_call.1} parent=1 // pred_check
      _
    $region47: #{tpu_custom_call.1} parent=1 // pred_check_branch
      %826 = sbr.rel (0) target = $region49
    $region48: #{tpu_custom_call.1} parent=1 // pred_region
      %828 = vsyncadd [#allocation5], 0
      %s829 = sshll.u32 [#allocation8], 4
      %s830 = int_to_ptr.vmem [resolvable:$true] %s829
      %s831 = sshll.u32 %s7, 4
      %s832 = int_to_ptr.hbm [resolvable:$true] %s831
      %837 = dma.vmem_to_hbm [thread:$0]  %s830, 256, %s832, [#allocation5], 128, 128, 8
    $region49: #{tpu_custom_call.1} parent=1 // pred_fallthru
      _
    // Predicated region
    $region50: #{tpu_custom_call.1} parent=1 // pred_check
      _
    $region51: #{tpu_custom_call.1} parent=1 // pred_check_branch
      %839 = sbr.rel (0) target = $region53
    $region52: #{tpu_custom_call.1} parent=1 // pred_region
      %841 = dma.done [#allocation5], 256
    $region53: #{tpu_custom_call.1} parent=1 // pred_fallthru
      _
    %842 = vsyncpa [#allocation4], 1
    %843 = vsyncpa [#allocation7], 1
    %844 = vsyncpa [#allocation5], 1

</llo_original>
